<compile_context>
chip_gen: v6e
topology: v6e:2x2x1
jax: 0.10.0
libtpu: 0.0.40
codegen_flags: <defaults>
</compile_context>

<pallas_src>
import numpy as np
import jax
import jax.numpy as jnp
from jax.experimental import pallas as pl
from jax.experimental.pallas import tpu as pltpu


def _round_up(n, m):
    return ((n + m - 1) // m) * m


def _tpu_vmem_capacity_bytes():
    """Physical VMEM per TensorCore; conservative (v7x) default if unknown."""
    try:
        info = pltpu.get_tpu_info()
        return int(getattr(info, "vmem_capacity_bytes", 64 * 1024 * 1024))
    except Exception:
        return 64 * 1024 * 1024


def _make_pool_kernel(ph, rows_per_step, offset, stride, has_row_axis):
    """Average pool (ph x pw, stride 1) fused with the [offset::stride] subsample.

    Separable formulation:
      * vertical ph-tap sum: unit-stride row loads + VPU adds (f32 accumulation)
      * horizontal pw taps + 1/(ph*pw) scale + column subsample: one constant
        selection-matrix matmul on the MXU (no strided sublane reads).
    """

    def pool_kernel(x_ref, sel_ref, o_ref):
        # x_ref:   (H, W, tbc)              input plane, channels lane-dense
        # sel_ref: (ow_s, W)                constant horizontal taps (scale folded in)
        # o_ref:   (rows_per_step, ow_s, tbc)
        sel = sel_ref[...]
        row0 = pl.program_id(1) * rows_per_step if has_row_axis else 0

        def compute_row(k):
            # global output row k  ->  input rows [offset + k*stride, ... + ph)
            base = offset + k * stride
            win = x_ref[pl.ds(base, ph), :, :].astype(jnp.float32)   # (ph, W, tbc)
            vsum = win[0]
            for i in range(1, ph):                                   # (ph-1) VPU adds
                vsum = vsum + win[i]
            # (ow_s, W) @ (W, tbc) -> (ow_s, tbc): horizontal taps + subsample + scale
            return jnp.dot(sel, vsum, preferred_element_type=jnp.float32)

        # TODO(synk): reuse vertical row-sums across adjacent output rows when stride < ph.
        if rows_per_step <= 16:
            for i in range(rows_per_step):                           # static unroll
                out_i = compute_row(row0 + i)
                o_ref[pl.ds(i, 1), :, :] = out_i[None].astype(o_ref.dtype)
        else:
            def body(i, carry):                                      # bounded live ranges
                out_i = compute_row(row0 + i)
                o_ref[pl.ds(i, 1), :, :] = out_i[None].astype(o_ref.dtype)
                return carry
            jax.lax.fori_loop(0, rows_per_step, body, 0)

    return pool_kernel


def _pool_channels_last_xla(x_l, pool_dim, subsample_factor):
    """Pure-XLA fallback (degenerate output or plane too large for VMEM)."""
    ph, pw = pool_dim
    s = subsample_factor
    offset = int(np.ceil(s / 2)) - 1
    if ph * pw != 1:
        acc = jax.lax.reduce_window(
            x_l.astype(jnp.float32), 0.0, jax.lax.add,
            window_dimensions=(ph, pw, 1), window_strides=(1, 1, 1), padding="VALID")
        x_l = (acc * (1.0 / float(ph * pw))).astype(x_l.dtype)
    return x_l[offset::s, offset::s, :]


class PoolPallas:
    """JAX / Pallas equivalent of the torch `Pool` module (forward pass)."""

    def __init__(self, kernel="average", subsample_factor=1, pool_dim=(1, 1)):
        if kernel != "average":
            raise NotImplementedError
        self.kernel = kernel
        self.subsample_factor = int(subsample_factor)
        self.pool_dim = tuple(int(p) for p in pool_dim)

    # ---------- preferred entry point: channels-last, no layout pass ----------
    def pool_channels_last(self, x_l):
        """x_l: (H, W, N) with N = B*C on the lane axis.  Returns (oh_s, ow_s, N)."""
        H, W, N = x_l.shape
        ph, pw = self.pool_dim
        s = self.subsample_factor
        offset = int(np.ceil(s / 2)) - 1

        if ph * pw == 1:                               # torch skips the conv entirely
            return x_l[offset::s, offset::s, :]

        oh, ow = H - ph + 1, W - pw + 1
        oh_s = max(0, -(-(oh - offset) // s))          # len(range(offset, oh, s))
        ow_s = max(0, -(-(ow - offset) // s))

        itemsize = jnp.dtype(x_l.dtype).itemsize
        unit_bytes = H * W * 128 * itemsize            # one 128-lane channel slab
        cap = _tpu_vmem_capacity_bytes()
        in_budget = max(1 << 20, min(8 << 20, cap // 16))   # ~8 MiB v5e/v6e, ~4 MiB v7x
        vmem_limit = max(32 << 20, min(64 << 20, cap // 2))

        if oh_s <= 0 or ow_s <= 0 or unit_bytes > in_budget:
            # TODO(synk): halo'd output-row tiling so very large planes stay on the
            # Pallas path instead of falling back to XLA.
            return _pool_channels_last_xla(x_l, self.pool_dim, s)

        # ---- channel tiling: lane-dense, generation-aware, grid >= 2 when possible
        n_pad = _round_up(N, 128)
        units = n_pad // 128
        t = 1
        for cand in range(1, units + 1):
            if units % cand:
                continue
            if cand * unit_bytes > in_budget:
                continue
            if units >= 2 and units // cand < 2:
                continue                               # keep >= 2 grid steps
            if ph * W * cand * 128 * 4 > (2 << 20):
                continue                               # modest per-row f32 working set
            t = cand
        tbc = 128 * t
        c_tiles = units // t

        # ---- split output rows across the grid when the channel grid is degenerate
        rows_per_step, row_tiles = oh_s, 1
        if c_tiles == 1 and oh_s >= 2:
            for rt in range(2, min(oh_s, 8) + 1):
                if oh_s % rt == 0:
                    row_tiles = rt
                    break
            if row_tiles == 1 and oh_s <= 8:
                row_tiles = oh_s
            rows_per_step = oh_s // row_tiles

        # ---- constant selection matrix: horizontal taps + [offset::s] + 1/(ph*pw)
        scale = 1.0 / float(ph * pw)
        sel_np = np.zeros((ow_s, W), dtype=np.float32)
        for m in range(ow_s):
            c0 = offset + m * s
            sel_np[m, c0:c0 + pw] = scale
        sel = jnp.asarray(sel_np)

        if n_pad != N:
            x_l = jnp.pad(x_l, ((0, 0), (0, 0), (0, n_pad - N)))
        # TODO(synk): for N << 128 the lane padding wastes DMA/VPU lanes; packing spatial
        # columns onto the lane axis would remove it but changes the kernel layout.

        kernel = _make_pool_kernel(ph, rows_per_step, offset, s,
                                   has_row_axis=(row_tiles > 1))

        if row_tiles > 1:
            grid = (c_tiles, row_tiles)
            in_specs = [
                pl.BlockSpec((H, W, tbc), lambda n, r: (0, 0, n)),
                pl.BlockSpec((ow_s, W), lambda n, r: (0, 0)),
            ]
            out_specs = pl.BlockSpec((rows_per_step, ow_s, tbc),
                                     lambda n, r: (r, 0, n))
            dims = ("parallel", "parallel")
        else:
            grid = (c_tiles,)
            in_specs = [
                pl.BlockSpec((H, W, tbc), lambda n: (0, 0, n)),
                pl.BlockSpec((ow_s, W), lambda n: (0, 0)),
            ]
            out_specs = pl.BlockSpec((oh_s, ow_s, tbc), lambda n: (0, 0, n))
            dims = ("parallel",)

        out_l = pl.pallas_call(
            kernel,
            out_shape=jax.ShapeDtypeStruct((oh_s, ow_s, n_pad), x_l.dtype),
            grid=grid,
            in_specs=in_specs,
            out_specs=out_specs,
            compiler_params=pltpu.CompilerParams(
                dimension_semantics=dims,
                vmem_limit_bytes=vmem_limit,
                # let XLA fuse the wrapper transpose/pad into the kernel's input DMA
                allow_input_fusion=[True, False],
            ),
        )(x_l, sel)

        return out_l[:, :, :N]

    # ---------- NCHW entry point matching the torch module ----------
    def __call__(self, x):
        B, C, H, W = x.shape
        ph, pw = self.pool_dim
        s = self.subsample_factor
        offset = int(np.ceil(s / 2)) - 1
        if ph * pw == 1:
            return x[:, :, offset::s, offset::s]
        N = B * C
        x_l = jnp.transpose(x.reshape(N, H, W), (1, 2, 0))      # (H, W, N)
        out_l = self.pool_channels_last(x_l)                    # (oh_s, ow_s, N)
        out = jnp.transpose(out_l, (2, 0, 1))                   # (N, oh_s, ow_s)
        return out.reshape(B, C, out.shape[1], out.shape[2])


def _reference(x, pool_dim, subsample_factor):
    """Pure-JAX reference reproducing the torch forward pass."""
    B, C, H, W = x.shape
    ph, pw = pool_dim
    if ph * pw != 1:
        w = (1.0 / (ph * pw)) * np.ones((1, 1, ph, pw), dtype=np.float32)
        x_flat = x.reshape(B * C, 1, H, W).astype(jnp.float32)
        out = jax.lax.conv_general_dilated(
            x_flat, jnp.asarray(w), window_strides=(1, 1), padding="VALID",
            dimension_numbers=("NCHW", "OIHW", "NCHW"),
            precision=jax.lax.Precision.HIGHEST)
        out = out.reshape(B, C, out.shape[2], out.shape[3]).astype(x.dtype)
    else:
        out = x
    s = subsample_factor
    offset = int(np.ceil(s / 2)) - 1
    return out[:, :, offset::s, offset::s]


if __name__ == "__main__":
    key = jax.random.PRNGKey(0)
    B, C, H, W = 2, 4, 16, 16
    x = jax.random.normal(key, (B, C, H, W), dtype=jnp.float32)

    configs = [((3, 3), 2),    # main config: 3x3 average pool, subsample 2
               ((3, 3), 1),    # no subsample (unit-stride path, 2 row tiles)
               ((2, 2), 3),    # non-zero offset path
               ((1, 1), 2),    # 1x1 filter -> pure slicing path
               ((3, 3), 30)]   # degenerate output -> guarded XLA fallback
    for pool_dim, s in configs:
        pool = PoolPallas("average", s, pool_dim)
        out = jax.block_until_ready(pool(x))
        ref = jax.block_until_ready(_reference(x, pool_dim, s))
        assert out.shape == ref.shape, (pool_dim, s, out.shape, ref.shape)
        np.testing.assert_allclose(np.asarray(out), np.asarray(ref),
                                   rtol=2e-3, atol=2e-3)

    # bf16 parity (kernel accumulates in f32, casts at the end)
    xb = x.astype(jnp.bfloat16)
    pool = PoolPallas("average", 2, (3, 3))
    outb = jax.block_until_ready(pool(xb))
    refb = jax.block_until_ready(_reference(xb, (3, 3), 2))
    np.testing.assert_allclose(np.asarray(outb.astype(jnp.float32)),
                               np.asarray(refb.astype(jnp.float32)),
                               rtol=2e-2, atol=2e-2)

    print("KERNEL_OK")
</pallas_src>

<mosaic_0001>
module attributes {stable_mosaic.version = 11 : i64} {
  func.func @pool_kernel(%arg0: i32, %arg1: i32, %arg2: memref<16x16x128xf32, #tpu.memory_space<vmem>>, %arg3: memref<7x16xf32, #tpu.memory_space<vmem>>, %arg4: memref<1x7x128xf32, #tpu.memory_space<vmem>>) attributes {dimension_semantics = [#tpu.dimension_semantics<parallel>, #tpu.dimension_semantics<parallel>], iteration_bounds = array<i64: 1, 7>, scalar_prefetch = 0 : i64, scratch_operands = 0 : i64, tpu.core_type = #tpu.core_type<tc>, window_params = [{transform_indices = @transform_0, window_bounds = array<i64: 16, 16, 128>}, {pipeline_mode = #tpu.pipeline_mode<synchronous>, transform_indices = @transform_1, window_bounds = array<i64: 7, 16>}, {transform_indices = @transform_2, window_bounds = array<i64: 1, 7, 128>}]} {
    %c0 = arith.constant 0 : index
    %c0_0 = arith.constant 0 : index
    %0 = vector.load %arg3[%c0, %c0_0] : memref<7x16xf32, #tpu.memory_space<vmem>>, vector<7x16xf32>
    %c1_i32 = arith.constant 1 : i32
    %1 = arith.muli %arg1, %c1_i32 : i32
    %c0_i32 = arith.constant 0 : i32
    %2 = arith.addi %1, %c0_i32 : i32
    %c2_i32 = arith.constant 2 : i32
    %3 = arith.muli %2, %c2_i32 : i32
    %c0_i32_1 = arith.constant 0 : i32
    %4 = arith.addi %c0_i32_1, %3 : i32
    %5 = arith.index_cast %4 : i32 to index
    %c0_2 = arith.constant 0 : index
    %c0_3 = arith.constant 0 : index
    %6 = vector.load %arg2[%5, %c0_2, %c0_3] : memref<16x16x128xf32, #tpu.memory_space<vmem>>, vector<3x16x128xf32>
    %7 = vector.extract_strided_slice %6 {offsets = [0, 0, 0], sizes = [1, 16, 128], strides = [1, 1, 1]} : vector<3x16x128xf32> to vector<1x16x128xf32>
    %8 = vector.shape_cast %7 : vector<1x16x128xf32> to vector<16x128xf32>
    %9 = vector.extract_strided_slice %6 {offsets = [1, 0, 0], sizes = [1, 16, 128], strides = [1, 1, 1]} : vector<3x16x128xf32> to vector<1x16x128xf32>
    %10 = vector.shape_cast %9 : vector<1x16x128xf32> to vector<16x128xf32>
    %11 = arith.addf %8, %10 : vector<16x128xf32>
    %12 = vector.extract_strided_slice %6 {offsets = [2, 0, 0], sizes = [1, 16, 128], strides = [1, 1, 1]} : vector<3x16x128xf32> to vector<1x16x128xf32>
    %13 = vector.shape_cast %12 : vector<1x16x128xf32> to vector<16x128xf32>
    %14 = arith.addf %11, %13 : vector<16x128xf32>
    %cst = arith.constant dense<0.000000e+00> : vector<7x128xf32>
    %15 = tpu.matmul %0, %14, %cst {dimension_numbers = #tpu.dot_dimension_numbers<[1], [0], [0], [1], [0, 0, 1, 1], [], []>} : vector<7x16xf32>, vector<16x128xf32>, vector<7x128xf32> -> vector<7x128xf32>
    %16 = vector.shape_cast %15 : vector<7x128xf32> to vector<1x7x128xf32>
    %c0_4 = arith.constant 0 : index
    %c0_5 = arith.constant 0 : index
    %c0_6 = arith.constant 0 : index
    %17 = vector.load %arg4[%c0_4, %c0_5, %c0_6] : memref<1x7x128xf32, #tpu.memory_space<vmem>>, vector<1x7x128xf32>
    tpu.vector_store %arg4[%c0_4, %c0_5, %c0_6], %16 {strides = array<i32>} : memref<1x7x128xf32, #tpu.memory_space<vmem>>, vector<1x7x128xf32>,
    return
  }
  func.func @transform_0(%arg0: i32, %arg1: i32) -> (i32, i32, i32) {
    %c0_i32 = arith.constant 0 : i32
    %c0_i32_0 = arith.constant 0 : i32
    %c0_i32_1 = arith.constant 0 : i32
    return %c0_i32, %c0_i32_0, %arg0 : i32, i32, i32
  }
  func.func @transform_1(%arg0: i32, %arg1: i32) -> (i32, i32) {
    %c0_i32 = arith.constant 0 : i32
    %c0_i32_0 = arith.constant 0 : i32
    %c0_i32_1 = arith.constant 0 : i32
    return %c0_i32, %c0_i32_0 : i32, i32
  }
  func.func @transform_2(%arg0: i32, %arg1: i32) -> (i32, i32, i32) {
    %c0_i32 = arith.constant 0 : i32
    %c0_i32_0 = arith.constant 0 : i32
    return %arg1, %c0_i32, %arg0 : i32, i32, i32
  }
}

</mosaic_0001>

<llo_original>
// kernel: tpu_custom_call.1
$region0: #{tpu_custom_call.1}
  #allocation0 [shape = 'u32[]', space=smem, size = 0x4, offset = 0x4, fixed_abs, tag = 'smem constant byte address 0x4 - core index']
  #allocation1 [shape = 'u32[144,128]{1,0:T(1,128)}', space=vmem, size = 0x12000, scoped, tag = 'internal scratch']
  %s0 = inlined_call_operand.hbm [shape: f32[16,16,128], index: 0, kind: input, shape index: {}]
  %s1 = inlined_call_operand.hbm [shape: f32[7,16], index: 1, kind: input, shape index: {}]
  %s2 = inlined_call_operand.hbm [shape: f32[7,7,128], index: 2, kind: output, shape index: {}]
  %s3 = sld [smem:[#allocation0]]
  $region49: #{tpu_custom_call.1} parent=0
    _
  %s5 = ssub.s32 1, %s3
  %s6 = scalar_select 0, %s5, %s3
  $region1: #{tpu_custom_call.1} parent=0
    #allocation2 [shape = 'u8[131072]{0}', space=vmem, size = 0x20000, scoped, tag = 'input window, operand 0, single buffered']
    #allocation3 [shape = 's32[2]{0}', space=sflag, size = 0x8, scoped, tag = 'scoped memory for tpu_custom_call.1']
    #allocation4 [shape = 's32[2]{0}', space=sflag, size = 0x8, scoped, tag = 'scoped memory for tpu_custom_call.1']
    #allocation5 [shape = 'u8[4096]{0}', space=vmem, size = 0x1000, scoped, tag = 'input window, operand 1, single buffered']
    #allocation6 [shape = 's32[1]{0}', space=sflag, size = 0x4, scoped, tag = 'scoped memory for tpu_custom_call.1']
    #allocation7 [shape = 'u8[8192]{0}', space=vmem, size = 0x2000, scoped, tag = 'output window, operand 0']
    %7 = vsyncpa [#allocation3], 0
    %8 = vsyncpa [#allocation6], 0
    %9 = vsyncpa [#allocation4], 0
    %s10 = scalar_lea.sflag [#allocation4], 1
    %11 = vsyncpa %s10, 0
    loop: start=0, step=1, limit=9
    $region2: #{tpu_custom_call.1} parent=1 // loop_pre_header
      _
    $region3: #{tpu_custom_call.1} parent=1 // loop_header
      %s13 = sphi 0, %s17
      %p14 = scmp.ge.s32.totalorder %s13, 9
      %s20 = sphi 0, %s32
      %s21 = sphi 0, %s28
      %s22 = sphi 0, %s20
      %s23 = sphi 0, %s21
      %s24 = sphi 0, %s22
      %s25 = sphi 0, %s23
      %s35 = sphi 0, %s37
      %s38 = sphi 0, %s35
      %s39 = sphi 0, %s38
      %s55 = sphi 0, %s39
      %s59 = sphi 0, %s59
      %s61 = sphi 0, %s59
      %s62 = sphi 0, %s61
      %s76 = sphi 0, %s62
      %s84 = sphi 0, %s86
      %s87 = sphi 0, %s84
      %s88 = sphi 0, %s87
      %s104 = sphi 0, %s88
    $region4: #{tpu_custom_call.1} parent=1 // loop_header_branch
      %16 = sbr.rel (%p14) target = $region8
    $region5: #{tpu_custom_call.1} parent=1 // loop_body
      %s18 = ssub.s32 %s13, 1
      %s19 = ssub.s32 %s13, 2
      %s26 = sadd.s32 1, %s21
      %p27 = scmp.ge.s32.totalorder %s26, 7
      %s28 = scalar_select %p27, 0, %s26
      %s29 = sadd.s32 1, %s20
      %s30 = scalar_select %p27, %s29, %s20
      %p31 = scmp.ge.s32.totalorder %s30, 1
      %s32 = scalar_select %p31, 0, %s30
      %s33 = ssub.s32 %s20, %s32
      %p34 = scmp.eq.s32.totalorder %s33, 0
      %s36 = sadd.s32 %s35, 1
      %s37 = scalar_select %p34, %s35, %s36
      %p40 = pneg %p34
      %p41 = scmp.eq.s32.totalorder %s13, 6
      %p42 = por %p40, %p41
      %p43 = scmp.ne.s32.totalorder %s35, %s38
      %p44 = scmp.eq.s32.totalorder %s13, 0
      %p45 = por %p43, %p44
      %p46 = scmp.ne.s32.totalorder %s35, %s38
      %p47 = scmp.eq.s32.totalorder %s18, 6
      %p48 = por %p46, %p47
      %p49 = scmp.ne.s32.totalorder %s38, %s39
      %p50 = scmp.eq.s32.totalorder %s18, 0
      %p51 = por %p49, %p50
      %p52 = scmp.ne.s32.totalorder %s38, %s39
      %p53 = scmp.eq.s32.totalorder %s19, 6
      %p54 = por %p52, %p53
      %p56 = scmp.ne.s32.totalorder %s39, %s55
      %p57 = scmp.eq.s32.totalorder %s19, 0
      %p58 = por %p56, %p57
      %s60 = sadd.s32 %s59, 1
      %p63 = scmp.eq.s32.totalorder %s13, 6
      %p64 = scmp.ne.s32.totalorder %s59, %s61
      %p65 = scmp.eq.s32.totalorder %s13, 0
      %p66 = por %p64, %p65
      %p67 = scmp.ne.s32.totalorder %s59, %s61
      %p68 = scmp.eq.s32.totalorder %s18, 6
      %p69 = por %p67, %p68
      %p70 = scmp.ne.s32.totalorder %s61, %s62
      %p71 = scmp.eq.s32.totalorder %s18, 0
      %p72 = por %p70, %p71
      %p73 = scmp.ne.s32.totalorder %s61, %s62
      %p74 = scmp.eq.s32.totalorder %s19, 6
      %p75 = por %p73, %p74
      %p77 = scmp.ne.s32.totalorder %s62, %s76
      %p78 = scmp.eq.s32.totalorder %s19, 0
      %p79 = por %p77, %p78
      %s80 = ssub.s32 %s21, %s28
      %s81 = ssub.s32 %s20, %s32
      %s82 = sor.u32 %s80, %s81
      %p83 = scmp.eq.s32.totalorder %s82, 0
      %s85 = sadd.s32 %s84, 1
      %s86 = scalar_select %p83, %s84, %s85
      %p89 = pneg %p83
      %p90 = scmp.eq.s32.totalorder %s13, 6
      %p91 = por %p89, %p90
      %p92 = scmp.ne.s32.totalorder %s84, %s87
      %p93 = scmp.eq.s32.totalorder %s13, 0
      %p94 = por %p92, %p93
      %p95 = scmp.ne.s32.totalorder %s84, %s87
      %p96 = scmp.eq.s32.totalorder %s18, 6
      %p97 = por %p95, %p96
      %p98 = scmp.ne.s32.totalorder %s87, %s88
      %p99 = scmp.eq.s32.totalorder %s18, 0
      %p100 = por %p98, %p99
      %p101 = scmp.ne.s32.totalorder %s87, %s88
      %p102 = scmp.eq.s32.totalorder %s19, 6
      %p103 = por %p101, %p102
      %p105 = scmp.ne.s32.totalorder %s88, %s104
      %p106 = scmp.eq.s32.totalorder %s19, 0
      %p107 = por %p105, %p106
      %p108 = scmp.le.s32.totalorder 1, %s13
      %p109 = scmp.lt.s32.totalorder %s13, 8
      %p110 = pnand %p108, %p109
      %p111 = pneg %p110
      // Predicated region
      $region9: #{tpu_custom_call.1} parent=5 // pred_check
        _
      $region10: #{tpu_custom_call.1} parent=5 // pred_check_branch
        %113 = sbr.rel (%p110) target = $region12
      $region11: #{tpu_custom_call.1} parent=5 // pred_region
        %s114 = ssub.s32 %s13, 1
        // Predicated region
        $region13: #{tpu_custom_call.1} parent=11 // pred_check
          %p115 = pneg %p51
        $region14: #{tpu_custom_call.1} parent=11 // pred_check_branch
          %117 = sbr.rel (%p115) target = $region16
        $region15: #{tpu_custom_call.1} parent=11 // pred_region
          %s119 = ssub.s32 4096, 4096
          %120 = vsyncadd [#allocation3], %s119
          %s121 = smul.addr %s22, 128
          %s122 = scalar_lea.hbm %s0, %s121
          %s123 = sshll.u32 [#allocation2], 4
          %s124 = int_to_ptr.vmem [resolvable:$true] %s123
          %129 = dma.hbm_to_vmem [thread:$0]  %s122, 4096, %s124, [#allocation3], 128, 128, 8
        $region16: #{tpu_custom_call.1} parent=11 // pred_fallthru
          _
        // Predicated region
        $region17: #{tpu_custom_call.1} parent=11 // pred_check
          %p130 = pneg %p72
        $region18: #{tpu_custom_call.1} parent=11 // pred_check_branch
          %132 = sbr.rel (%p130) target = $region20
        $region19: #{tpu_custom_call.1} parent=11 // pred_region
          %s134 = ssub.s32 128, 128
          %135 = vsyncadd [#allocation6], %s134
          %s137 = sshll.u32 [#allocation5], 4
          %s138 = int_to_ptr.vmem [resolvable:$true] %s137
          %140 = dma.hbm_to_vmem [thread:$0]  %s1, 128, %s138, [#allocation6]
        $region20: #{tpu_custom_call.1} parent=11 // pred_fallthru
          _
      $region12: #{tpu_custom_call.1} parent=5 // pred_fallthru
        _
      %p141 = scmp.lt.s32.totalorder %s13, 7
      // Predicated region
      $region21: #{tpu_custom_call.1} parent=5 // pred_check
        %p142 = pneg %p141
      $region22: #{tpu_custom_call.1} parent=5 // pred_check_branch
        %144 = sbr.rel (%p142) target = $region24
      $region23: #{tpu_custom_call.1} parent=5 // pred_region
        _
      $region24: #{tpu_custom_call.1} parent=5 // pred_fallthru
        _
      %p145 = scmp.le.s32.totalorder 1, %s13
      %p146 = scmp.lt.s32.totalorder %s13, 8
      %p147 = pnand %p145, %p146
      %p148 = pneg %p147
      // Predicated region
      $region25: #{tpu_custom_call.1} parent=5 // pred_check
        _
      $region26: #{tpu_custom_call.1} parent=5 // pred_check_branch
        %150 = sbr.rel (%p147) target = $region28
      $region27: #{tpu_custom_call.1} parent=5 // pred_region
        %s151 = ssub.s32 %s13, 1
        // Predicated region
        $region29: #{tpu_custom_call.1} parent=27 // pred_check
          %p152 = pneg %p51
        $region30: #{tpu_custom_call.1} parent=27 // pred_check_branch
          %154 = sbr.rel (%p152) target = $region32
        $region31: #{tpu_custom_call.1} parent=27 // pred_region
          %155 = dma.done [#allocation3], 4096
        $region32: #{tpu_custom_call.1} parent=27 // pred_fallthru
          _
        // Predicated region
        $region33: #{tpu_custom_call.1} parent=27 // pred_check
          %p156 = pneg %p72
        $region34: #{tpu_custom_call.1} parent=27 // pred_check_branch
          %158 = sbr.rel (%p156) target = $region36
        $region35: #{tpu_custom_call.1} parent=27 // pred_region
          %159 = dma.done [#allocation6], 128
        $region36: #{tpu_custom_call.1} parent=27 // pred_fallthru
          _
        %p160 = pneg %p51
        %p161 = pneg %p48
        %p162 = pneg %p72
        %p163 = pneg %p69
        %p164 = pneg %p100
        %p165 = pneg %p97
        %s166 = sand.u32 %s87, 1
        %s167 = scalar_lea.sflag [#allocation4], %s166
        %s168 = sand.u32 %s87, 1
        %s169 = smul.addr %s168, 8
        %s170 = scalar_lea.vmem [#allocation7], %s169
        %v171 = vld [vmem:[#allocation5] sm:$0x7f]
        %s172 = smul.u32 %s23, 2
        %s173 = smul.u32 %s172, 16
        %s174 = scalar_lea.vmem [#allocation2], %s173
        %v175 = vld [vmem:[%s174] sm:$0xff]
        %v176 = vld [vmem:[%s174 + $0x8] sm:$0xff]
        %v177 = vld [vmem:[%s174 + $0x10] sm:$0xff]
        %v178 = vld [vmem:[%s174 + $0x18] sm:$0xff]
        %v179 = vld [vmem:[%s174 + $0x20] sm:$0xff]
        %v180 = vld [vmem:[%s174 + $0x28] sm:$0xff]
        %v181 = vadd.f32 %v175, %v177
        %v182 = vadd.f32 %v176, %v178
        %v183 = vadd.f32 %v181, %v179
        %v184 = vadd.f32 %v182, %v180
        %vm185 = vcmask 130048
        %v187 = vsel %vm185, %v171, 0
        %189 = vmatprep.subr.mxu0 0.0
        %190 = vmatpush1.msra.mxu0 0.0
        %191 = vmatprep.subr.mxu0 0.0
        %192 = vmatpush1.msra.mxu0 0.0
        %193 = vmatprep.subr.mxu0 0.0
        %194 = vmatpush1.msra.mxu0 0.0
        %195 = vmatprep.subr.mxu0 0.0
        %196 = vmatpush1.msra.mxu0 0.0
        %197 = vmatprep.subr.mxu0 0.0
        %198 = vmatpush1.msra.mxu0 0.0
        %199 = vmatprep.subr.mxu0 0.0
        %200 = vmatpush1.msra.mxu0 0.0
        %201 = vmatprep.subr.mxu0 0.0
        %202 = vmatpush1.msra.mxu0 0.0
        %203 = vmatprep.subr.mxu0 0.0
        %204 = vmatpush1.msra.mxu0 0.0
        %205 = vmatprep.subr.mxu0 0.0
        %206 = vmatpush1.msra.mxu0 0.0
        %207 = vmatprep.subr.mxu0 0.0
        %208 = vmatpush1.msra.mxu0 0.0
        %209 = vmatprep.subr.mxu0 0.0
        %210 = vmatpush1.msra.mxu0 0.0
        %211 = vmatprep.subr.mxu0 0.0
        %212 = vmatpush1.msra.mxu0 0.0
        %213 = vmatprep.subr.mxu0 0.0
        %214 = vmatpush1.msra.mxu0 0.0
        %215 = vmatprep.subr.mxu0 0.0
        %216 = vmatpush1.msra.mxu0 0.0
        %217 = vmatprep.subr.mxu0 0.0
        %218 = vmatpush1.msra.mxu0 %v184
        %219 = vmatprep.subr.mxu0 0.0
        %220 = vmatpush1.msra.mxu0 %v183
        %221 = vmatprep.subr.mxu0 0.0
        %222 = vmatpush2.msra.mxu0 0.0
        %223 = vmatprep.subr.mxu0 0.0
        %224 = vmatpush2.msra.mxu0 0.0
        %225 = vmatprep.subr.mxu0 0.0
        %226 = vmatpush2.msra.mxu0 0.0
        %227 = vmatprep.subr.mxu0 0.0
        %228 = vmatpush2.msra.mxu0 0.0
        %229 = vmatprep.subr.mxu0 0.0
        %230 = vmatpush2.msra.mxu0 0.0
        %231 = vmatprep.subr.mxu0 0.0
        %232 = vmatpush2.msra.mxu0 0.0
        %233 = vmatprep.subr.mxu0 0.0
        %234 = vmatpush2.msra.mxu0 0.0
        %235 = vmatprep.subr.mxu0 0.0
        %236 = vmatpush2.msra.mxu0 0.0
        %237 = vmatprep.subr.mxu0 0.0
        %238 = vmatpush2.msra.mxu0 0.0
        %239 = vmatprep.subr.mxu0 0.0
        %240 = vmatpush2.msra.mxu0 0.0
        %241 = vmatprep.subr.mxu0 0.0
        %242 = vmatpush2.msra.mxu0 0.0
        %243 = vmatprep.subr.mxu0 0.0
        %244 = vmatpush2.msra.mxu0 0.0
        %245 = vmatprep.subr.mxu0 0.0
        %246 = vmatpush2.msra.mxu0 0.0
        %247 = vmatprep.subr.mxu0 0.0
        %248 = vmatpush2.msra.mxu0 0.0
        %249 = vmatprep.subr.mxu0 0.0
        %250 = vmatpush2.msra.mxu0 0.0
        %251 = vmatprep.subr.mxu0 0.0
        %252 = vmatpush2.msra.mxu0 0.0
        %253 = vmatprep.mubr.f32.mxu0 0.0
        %254 = vmatmul.mubr.f32.gmra.mxu0 %v187
        %v255 = vpop.f32.mrf.mxu0
        %v256 = vadd.f32 0.0, %v255
        %v257 = vpop.f32.mrf.mxu0
        %258 = vdwg.mxu0
        %259 = vst [vmem:[%s170] sm:$0x7f] %v256
        %s260 = sand.u32 %s87, 1
        %s261 = scalar_lea.sflag [#allocation4], %s260
        %s262 = sand.u32 %s87, 1
        %s263 = smul.addr %s262, 8
        %s264 = scalar_lea.vmem [#allocation7], %s263
        // Predicated region
        $region37: #{tpu_custom_call.1} parent=27 // pred_check
          %p265 = pneg %p97
        $region38: #{tpu_custom_call.1} parent=27 // pred_check_branch
          %267 = sbr.rel (%p265) target = $region40
        $region39: #{tpu_custom_call.1} parent=27 // pred_region
          %s269 = ssub.s32 128, 128
          %270 = vsyncadd %s261, %s269
          %s271 = sadd.s32 %s22, %s23
          %s272 = smul.addr %s271, 128
          %s273 = scalar_lea.hbm %s2, %s272
          %s275 = sshll.u32 %s264, 4
          %s276 = int_to_ptr.vmem [resolvable:$true] %s275
          %278 = dma.vmem_to_hbm [thread:$0]  %s276, 128, %s273, %s261
        $region40: #{tpu_custom_call.1} parent=27 // pred_fallthru
          _
      $region28: #{tpu_custom_call.1} parent=5 // pred_fallthru
        _
      %p279 = scmp.le.s32.totalorder 2, %s13
      // Predicated region
      $region41: #{tpu_custom_call.1} parent=5 // pred_check
        %p280 = pneg %p279
      $region42: #{tpu_custom_call.1} parent=5 // pred_check_branch
        %282 = sbr.rel (%p280) target = $region44
      $region43: #{tpu_custom_call.1} parent=5 // pred_region
        %s283 = ssub.s32 %s13, 2
        // Predicated region
        $region45: #{tpu_custom_call.1} parent=43 // pred_check
          %p284 = pneg %p103
        $region46: #{tpu_custom_call.1} parent=43 // pred_check_branch
          %286 = sbr.rel (%p284) target = $region48
        $region47: #{tpu_custom_call.1} parent=43 // pred_region
          %s287 = sand.u32 %s88, 1
          %s288 = scalar_lea.sflag [#allocation4], %s287
          %s289 = sand.u32 %s88, 1
          %s290 = smul.addr %s289, 8
          %s291 = scalar_lea.vmem [#allocation7], %s290
          %292 = dma.done %s288, 128
        $region48: #{tpu_custom_call.1} parent=43 // pred_fallthru
          _
      $region44: #{tpu_custom_call.1} parent=5 // pred_fallthru
        _
    $region6: #{tpu_custom_call.1} parent=1 // loop_footer
      %s17 = sadd.s32 1, %s13
    $region7: #{tpu_custom_call.1} parent=1 // loop_footer_branch
      %12 = sbr.rel target = $region3
    $region8: #{tpu_custom_call.1} parent=1 // loop_exit
      _
    %293 = vsyncpa [#allocation3], 1
    %s294 = scalar_lea.sflag [#allocation3], 1
    %295 = vsyncpa %s294, 1
    %296 = vsyncpa [#allocation6], 1
    %297 = vsyncpa [#allocation4], 1
    %s298 = scalar_lea.sflag [#allocation4], 1
    %299 = vsyncpa %s298, 1

</llo_original>
